<compile_context>
chip_gen: v6e
topology: v6e:2x2x1
jax: 0.10.0
libtpu: 0.0.40
codegen_flags: <defaults>
</compile_context>

<pallas_src>
import math

import jax
import jax.numpy as jnp
from jax.experimental import pallas as pl
from jax.experimental.pallas import tpu as pltpu

_LANE = 128
_TILE_TARGET_BYTES = 2 * 1024 * 1024      # grow per-step traffic up to ~2 MiB
_STEP_MAX_BYTES_CAP = 16 * 1024 * 1024    # single pipeline steps never exceed this
_EDGE = 512                               # target block edge when tiling trailing dims


def _reduce_permutation(shape, dims):
    """Drop size-1 axes and coalesce runs that stay adjacent (and in order) in the output.

    Returns:
      groups_in : tuple of groups (each a tuple of original input axes), in input order.
      rperm     : output order of those groups (a permutation of range(len(groups_in))).
    """
    kept = [d for d in dims if shape[d] != 1]
    pos = {ax: i for i, ax in enumerate(sorted(kept))}     # axis -> rank among kept axes
    groups_out = []
    for ax in kept:
        if groups_out and pos[groups_out[-1][-1]] == pos[ax] - 1:
            groups_out[-1].append(ax)
        else:
            groups_out.append([ax])
    groups_out = [tuple(g) for g in groups_out]
    groups_in = tuple(sorted(groups_out, key=lambda g: g[0]))
    gidx = {g: i for i, g in enumerate(groups_in)}
    rperm = tuple(gidx[g] for g in groups_out)
    return groups_in, rperm


def _sublane_multiple(itemsize):
    return {4: 8, 2: 16, 1: 32}.get(itemsize, 8)


def _padded_block_bytes(block, itemsize):
    """VMEM footprint of one block after layout padding (lanes->128, sublanes->8/16/32)."""
    sub = _sublane_multiple(itemsize)
    lead = 1
    for d in block[:-2]:
        lead *= int(d)
    sl = -(-int(block[-2]) // sub) * sub
    ln = -(-int(block[-1]) // _LANE) * _LANE
    return lead * sl * ln * itemsize


def _largest_divisor(n, cap, multiple_of=1, prefer_even_count=False, max_iters=1 << 16):
    """Largest d <= cap with d | n and multiple_of | d (None if there is none).

    With prefer_even_count, prefer a d giving an even n // d (keeps v7x's 2 TensorCores
    evenly loaded) as long as it is at least half of the unconditional best.
    """
    n = int(n)
    cap = int(min(cap, n))
    cap -= cap % multiple_of
    best = even = None
    d, iters = cap, 0
    while d >= multiple_of and iters < max_iters:
        if n % d == 0:
            if best is None:
                best = d
            if (n // d) % 2 == 0:
                even = d
                break
            if not prefer_even_count:
                break
        d -= multiple_of
        iters += 1
    if prefer_even_count and even is not None and best is not None and even * 2 >= best:
        return even
    return best


def _vmem_budget_bytes():
    try:
        cap = int(pltpu.get_tpu_info().vmem_capacity_bytes)
    except Exception:
        cap = 64 * 1024 * 1024            # conservative: v7x has 64 MiB / TensorCore
    return max(32 * 1024 * 1024, int(0.8 * cap))


def permute_pallas(x, dims):
    """Pallas-TPU equivalent of ``torch.Tensor.permute(*dims)`` / ``jnp.transpose``."""
    ndim = x.ndim
    dims = tuple(int(d) % ndim for d in dims)
    assert sorted(dims) == list(range(ndim)), "dims must be a permutation of range(x.ndim)"
    out_shape = tuple(x.shape[d] for d in dims)

    if x.size == 0 or ndim < 2:
        return jnp.transpose(x, dims)

    groups_in, rperm = _reduce_permutation(x.shape, dims)
    r = len(groups_in)
    if r <= 1 or rperm == tuple(range(r)):
        # Only size-1 axes move: linear memory order is untouched, so this is a free
        # (order-preserving) reshape -- no data movement to express as a kernel.
        return jnp.transpose(x, dims)

    itemsize = x.dtype.itemsize
    cshape = tuple(math.prod(x.shape[ax] for ax in g) for g in groups_in)
    oshape_c = tuple(cshape[g] for g in rperm)
    xc = x.reshape(cshape)                       # free, order-preserving collapse

    # ---------------------------------------------------------------- block sizes
    # Groups in the trailing-two dims of either view must live inside the kernel tile
    # (full extent or 8/128-multiple blocks); every other group is reordered for free
    # via the grid index_maps (block size 1).
    tile_set = {r - 1, r - 2, rperm[-1], rperm[-2]}
    need = {g: (_LANE if (g == r - 1 or g == rperm[-1]) else 8) for g in tile_set}
    b = {g: (cshape[g] if g in tile_set else 1) for g in range(r)}

    def step_bytes():
        in_blk = tuple(b[g] for g in range(r))
        out_blk = tuple(b[g] for g in rperm)
        return (_padded_block_bytes(in_blk, itemsize)
                + _padded_block_bytes(out_blk, itemsize))

    vmem_budget = _vmem_budget_bytes()
    headroom = 4 * 1024 * 1024
    step_max = min((vmem_budget - headroom) // 2, _STEP_MAX_BYTES_CAP)

    # Shrink oversized tiles: block trailing-view groups in 128/8-multiples, aiming for
    # ~512-wide f32 edges (the measured ~85%-of-HBM-roofline sweet spot); every blocked
    # group becomes an extra grid dimension.
    edge = _EDGE
    while step_bytes() > step_max and edge >= _LANE:
        for g in sorted(tile_set, key=lambda g: -cshape[g]):
            if step_bytes() <= step_max:
                break
            if b[g] > edge:
                d = _largest_divisor(cshape[g], edge, multiple_of=need[g])
                if d is not None and d < b[g]:
                    b[g] = d
        edge //= 2
    # TODO(synk): dims with no 8/128-multiple divisors keep full-extent blocks and can
    # still exceed the VMEM budget for pathological shapes (needs cdiv-grid edge blocks).

    # Grow the largest pure-grid group so each pipeline step moves ~2 MiB (amortizes the
    # ~0.35us/step overhead when the natural per-step tile is tiny).
    pure_grid = [g for g in range(r) if g not in tile_set]
    if pure_grid and step_bytes() < _TILE_TARGET_BYTES:
        gg = max(pure_grid, key=lambda g: cshape[g])
        if cshape[gg] > 1:
            unit = max(step_bytes(), 1)
            other_steps = math.prod(
                cshape[g] // b[g] for g in range(r) if g != gg and b[g] < cshape[g])
            max_blk = cshape[gg] if other_steps >= 2 else max(1, cshape[gg] // 2)
            cap = min(max_blk, max(1, _TILE_TARGET_BYTES // unit),
                      max(1, step_max // unit))
            if cap >= 2:
                d = _largest_divisor(cshape[gg], cap, multiple_of=1,
                                     prefer_even_count=(other_steps % 2 == 1))
                if d is not None and d > 1:
                    b[gg] = d

    # ------------------------------------------------------------------- grid/specs
    gridded = [g for g in rperm if b[g] < cshape[g]]     # output-major iteration order
    grid = tuple(cshape[g] // b[g] for g in gridded)
    gpos = {g: i for i, g in enumerate(gridded)}
    if not grid:
        grid = (1,)                                      # single-step pipeline

    in_block = tuple(b[g] for g in range(r))
    out_block = tuple(b[g] for g in rperm)

    def in_index_map(*ids):
        return tuple(ids[gpos[g]] if g in gpos else 0 for g in range(r))

    def out_index_map(*ids):
        return tuple(ids[gpos[g]] if g in gpos else 0 for g in rperm)

    # The body is a single tile transpose (leading-group reordering already happened via
    # grid/DMA addressing); the output block is the transposed tile's NATURAL shape, so
    # there is no in-kernel reshape and writeback is as lane-dense as the output layout
    # allows.
    # TODO(synk): for sub-32-bit dtypes, pltpu.bitcast-packing lane pairs/quads into u32
    # before the transpose would further cut relayout/store traffic (esp. on v5e).
    def kernel(x_ref, o_ref):
        o_ref[...] = jnp.transpose(x_ref[...], rperm)

    vmem_limit = int(min(vmem_budget,
                         max(2 * step_bytes() + headroom, 32 * 1024 * 1024)))
    compiler_params = pltpu.CompilerParams(
        dimension_semantics=("parallel",) * len(grid),
        vmem_limit_bytes=vmem_limit)
    cost = pl.CostEstimate(flops=0, transcendentals=0,
                           bytes_accessed=int(2 * x.size * itemsize))

    yc = pl.pallas_call(
        kernel,
        out_shape=jax.ShapeDtypeStruct(oshape_c, x.dtype),
        grid=grid,
        in_specs=[pl.BlockSpec(in_block, in_index_map)],
        out_specs=pl.BlockSpec(out_block, out_index_map),
        compiler_params=compiler_params,
        cost_estimate=cost,
    )(xc)

    return yc.reshape(out_shape)                          # free, order-preserving expand


class PermuteLayer:
    """JAX/Pallas equivalent of the PyTorch PermuteLayer module."""

    def __init__(self, dims):
        self.dims = tuple(dims)

    def __call__(self, x):
        return permute_pallas(x, self.dims)


if __name__ == "__main__":
    key = jax.random.PRNGKey(0)
    k1, k2, k3 = jax.random.split(key, 3)

    # Small NCHW input, matching the ViT-style usage of PermuteLayer.
    x = jax.random.normal(k1, (2, 4, 16, 16), dtype=jnp.float32)
    layer = PermuteLayer((0, 2, 3, 1))                    # NCHW -> NHWC
    out = jax.block_until_ready(layer(x))
    ref = jnp.transpose(x, (0, 2, 3, 1))
    assert out.shape == ref.shape and out.dtype == ref.dtype
    assert bool(jnp.array_equal(out, ref)), "NCHW->NHWC permute mismatch"

    # Inverse permute (NHWC -> NCHW) exercises a different tile-local transpose.
    y = jax.random.normal(k2, (2, 16, 16, 4), dtype=jnp.float32)
    out2 = jax.block_until_ready(permute_pallas(y, (0, 3, 1, 2)))
    assert bool(jnp.array_equal(out2, jnp.transpose(y, (0, 3, 1, 2)))), "NHWC->NCHW mismatch"

    # Plain 2-D transpose exercises the reduced rank-2 path.
    z = jax.random.normal(k3, (256, 384), dtype=jnp.float32)
    out3 = jax.block_until_ready(permute_pallas(z, (1, 0)))
    assert bool(jnp.array_equal(out3, z.T)), "2-D transpose mismatch"

    print("KERNEL_OK")
</pallas_src>

<mosaic_0001>
module attributes {stable_mosaic.version = 11 : i64} {
  func.func @kernel(%arg0: i32, %arg1: memref<1x4x256xf32, #tpu.memory_space<vmem>>, %arg2: memref<1x256x4xf32, #tpu.memory_space<vmem>>) attributes {dimension_semantics = [#tpu.dimension_semantics<parallel>], iteration_bounds = array<i64: 2>, scalar_prefetch = 0 : i64, scratch_operands = 0 : i64, tpu.core_type = #tpu.core_type<tc>, window_params = [{transform_indices = @transform_0, window_bounds = array<i64: 1, 4, 256>}, {transform_indices = @transform_1, window_bounds = array<i64: 1, 256, 4>}]} {
    %c0 = arith.constant 0 : index
    %c0_0 = arith.constant 0 : index
    %c0_1 = arith.constant 0 : index
    %0 = vector.load %arg1[%c0, %c0_0, %c0_1] : memref<1x4x256xf32, #tpu.memory_space<vmem>>, vector<1x4x256xf32>
    %1 = tpu.transpose %0, [0, 2, 1] : vector<1x4x256xf32> -> vector<1x256x4xf32>
    %c0_2 = arith.constant 0 : index
    %c0_3 = arith.constant 0 : index
    %c0_4 = arith.constant 0 : index
    %2 = vector.load %arg2[%c0_2, %c0_3, %c0_4] : memref<1x256x4xf32, #tpu.memory_space<vmem>>, vector<1x256x4xf32>
    tpu.vector_store %arg2[%c0_2, %c0_3, %c0_4], %1 {strides = array<i32>} : memref<1x256x4xf32, #tpu.memory_space<vmem>>, vector<1x256x4xf32>,
    return
  }
  func.func @transform_0(%arg0: i32) -> (i32, i32, i32) {
    %c0_i32 = arith.constant 0 : i32
    %c0_i32_0 = arith.constant 0 : i32
    %c0_i32_1 = arith.constant 0 : i32
    return %arg0, %c0_i32, %c0_i32_0 : i32, i32, i32
  }
  func.func @transform_1(%arg0: i32) -> (i32, i32, i32) {
    %c0_i32 = arith.constant 0 : i32
    %c0_i32_0 = arith.constant 0 : i32
    %c0_i32_1 = arith.constant 0 : i32
    return %arg0, %c0_i32, %c0_i32_0 : i32, i32, i32
  }
}

</mosaic_0001>

<llo_original>
// kernel: tpu_custom_call.1
$region0: #{tpu_custom_call.1}
  #allocation0 [shape = 'u32[]', space=smem, size = 0x4, offset = 0x4, fixed_abs, tag = 'smem constant byte address 0x4 - core index']
  #allocation1 [shape = 'u32[144,128]{1,0:T(1,128)}', space=vmem, size = 0x12000, scoped, tag = 'internal scratch']
  %s0 = inlined_call_operand.hbm [shape: f32[2,4,256], index: 0, kind: input, shape index: {}]
  %s1 = inlined_call_operand.vmem [shape: f32[2,256,4], index: 1, kind: output, shape index: {}]
  %s2 = sld [smem:[#allocation0]]
  $region41: #{tpu_custom_call.1} parent=0
    _
  %s4 = ssub.s32 1, %s2
  %s5 = scalar_select 0, %s4, %s2
  $region1: #{tpu_custom_call.1} parent=0
    #allocation2 [shape = 'u8[8192]{0}', space=vmem, size = 0x2000, scoped, tag = 'input window, operand 0']
    #allocation3 [shape = 's32[2]{0}', space=sflag, size = 0x8, scoped, tag = 'scoped memory for tpu_custom_call.1']
    %6 = vsyncpa [#allocation3], 0
    %s7 = scalar_lea.sflag [#allocation3], 1
    %8 = vsyncpa %s7, 0
    loop: start=0, step=1, limit=4
    $region2: #{tpu_custom_call.1} parent=1 // loop_pre_header
      _
    $region3: #{tpu_custom_call.1} parent=1 // loop_header
      %s10 = sphi 0, %s14
      %p11 = scmp.ge.s32.totalorder %s10, 4
      %s20 = sphi 0, %s22
      %s23 = sphi 0, %s20
      %s24 = sphi 0, %s23
      %s40 = sphi 0, %s24
      %s46 = sphi 0, %s48
      %s49 = sphi 0, %s46
      %s50 = sphi 0, %s49
      %s66 = sphi 0, %s50
    $region4: #{tpu_custom_call.1} parent=1 // loop_header_branch
      %13 = sbr.rel (%p11) target = $region8
    $region5: #{tpu_custom_call.1} parent=1 // loop_body
      %s15 = ssub.s32 %s10, 1
      %s16 = ssub.s32 %s10, 2
      %s17 = sadd.s32 %s10, 1
      %s18 = ssub.s32 %s10, %s17
      %p19 = scmp.eq.s32.totalorder %s18, 0
      %s21 = sadd.s32 %s20, 1
      %s22 = scalar_select %p19, %s20, %s21
      %p25 = pneg %p19
      %p26 = scmp.eq.s32.totalorder %s10, 1
      %p27 = por %p25, %p26
      %p28 = scmp.ne.s32.totalorder %s20, %s23
      %p29 = scmp.eq.s32.totalorder %s10, 0
      %p30 = por %p28, %p29
      %p31 = scmp.ne.s32.totalorder %s20, %s23
      %p32 = scmp.eq.s32.totalorder %s15, 1
      %p33 = por %p31, %p32
      %p34 = scmp.ne.s32.totalorder %s23, %s24
      %p35 = scmp.eq.s32.totalorder %s15, 0
      %p36 = por %p34, %p35
      %p37 = scmp.ne.s32.totalorder %s23, %s24
      %p38 = scmp.eq.s32.totalorder %s16, 1
      %p39 = por %p37, %p38
      %p41 = scmp.ne.s32.totalorder %s24, %s40
      %p42 = scmp.eq.s32.totalorder %s16, 0
      %p43 = por %p41, %p42
      %s44 = ssub.s32 %s10, %s17
      %p45 = scmp.eq.s32.totalorder %s44, 0
      %s47 = sadd.s32 %s46, 1
      %s48 = scalar_select %p45, %s46, %s47
      %p51 = pneg %p45
      %p52 = scmp.eq.s32.totalorder %s10, 1
      %p53 = por %p51, %p52
      %p54 = scmp.ne.s32.totalorder %s46, %s49
      %p55 = scmp.eq.s32.totalorder %s10, 0
      %p56 = por %p54, %p55
      %p57 = scmp.ne.s32.totalorder %s46, %s49
      %p58 = scmp.eq.s32.totalorder %s15, 1
      %p59 = por %p57, %p58
      %p60 = scmp.ne.s32.totalorder %s49, %s50
      %p61 = scmp.eq.s32.totalorder %s15, 0
      %p62 = por %p60, %p61
      %p63 = scmp.ne.s32.totalorder %s49, %s50
      %p64 = scmp.eq.s32.totalorder %s16, 1
      %p65 = por %p63, %p64
      %p67 = scmp.ne.s32.totalorder %s50, %s66
      %p68 = scmp.eq.s32.totalorder %s16, 0
      %p69 = por %p67, %p68
      %p70 = scmp.le.s32.totalorder 1, %s10
      %p71 = scmp.lt.s32.totalorder %s10, 3
      %p72 = pnand %p70, %p71
      %p73 = pneg %p72
      // Predicated region
      $region9: #{tpu_custom_call.1} parent=5 // pred_check
        _
      $region10: #{tpu_custom_call.1} parent=5 // pred_check_branch
        %75 = sbr.rel (%p72) target = $region12
      $region11: #{tpu_custom_call.1} parent=5 // pred_region
        %s76 = ssub.s32 %s10, 1
      $region12: #{tpu_custom_call.1} parent=5 // pred_fallthru
        _
      %p77 = scmp.lt.s32.totalorder %s10, 2
      // Predicated region
      $region13: #{tpu_custom_call.1} parent=5 // pred_check
        %p78 = pneg %p77
      $region14: #{tpu_custom_call.1} parent=5 // pred_check_branch
        %80 = sbr.rel (%p78) target = $region16
      $region15: #{tpu_custom_call.1} parent=5 // pred_region
        // Predicated region
        $region17: #{tpu_custom_call.1} parent=15 // pred_check
          %p81 = pneg %p30
        $region18: #{tpu_custom_call.1} parent=15 // pred_check_branch
          %83 = sbr.rel (%p81) target = $region20
        $region19: #{tpu_custom_call.1} parent=15 // pred_region
          %s84 = sand.u32 %s20, 1
          %s85 = scalar_lea.sflag [#allocation3], %s84
          %s86 = sand.u32 %s20, 1
          %s87 = smul.addr %s86, 8
          %s88 = scalar_lea.vmem [#allocation2], %s87
          %s90 = ssub.s32 128, 128
          %91 = vsyncadd %s85, %s90
          %s92 = smul.addr %s10, 2
          %s93 = smul.addr %s92, 64
          %s94 = scalar_lea.hbm %s0, %s93
          %s96 = sshll.u32 %s88, 4
          %s97 = int_to_ptr.vmem [resolvable:$true] %s96
          %99 = dma.hbm_to_vmem [thread:$0]  %s94, 128, %s97, %s85
        $region20: #{tpu_custom_call.1} parent=15 // pred_fallthru
          _
      $region16: #{tpu_custom_call.1} parent=5 // pred_fallthru
        _
      %p100 = scmp.le.s32.totalorder 1, %s10
      %p101 = scmp.lt.s32.totalorder %s10, 3
      %p102 = pnand %p100, %p101
      %p103 = pneg %p102
      // Predicated region
      $region21: #{tpu_custom_call.1} parent=5 // pred_check
        _
      $region22: #{tpu_custom_call.1} parent=5 // pred_check_branch
        %105 = sbr.rel (%p102) target = $region24
      $region23: #{tpu_custom_call.1} parent=5 // pred_region
        %s106 = ssub.s32 %s10, 1
        %s107 = sand.u32 %s23, 1
        %s108 = scalar_lea.sflag [#allocation3], %s107
        %s109 = sand.u32 %s23, 1
        %s110 = smul.addr %s109, 8
        %s111 = scalar_lea.vmem [#allocation2], %s110
        // Predicated region
        $region25: #{tpu_custom_call.1} parent=23 // pred_check
          %p112 = pneg %p36
        $region26: #{tpu_custom_call.1} parent=23 // pred_check_branch
          %114 = sbr.rel (%p112) target = $region28
        $region27: #{tpu_custom_call.1} parent=23 // pred_region
          %115 = dma.done %s108, 128
        $region28: #{tpu_custom_call.1} parent=23 // pred_fallthru
          _
        %s116 = sand.u32 %s23, 1
        %s117 = scalar_lea.sflag [#allocation3], %s116
        %s118 = sand.u32 %s23, 1
        %s119 = smul.addr %s118, 8
        %s120 = scalar_lea.vmem [#allocation2], %s119
        %p121 = pneg %p36
        %p122 = pneg %p33
        %p123 = pneg %p62
        %p124 = pneg %p59
        %p125 = scmp.lt.s32.totalorder %s15, 1
        %s126 = scalar_select %p125, %s15, 1
        %s127 = smul.addr %s126, 32
        %s128 = smul.addr %s127, 8
        %s129 = scalar_lea.vmem %s1, %s128
        %p130 = scmp.lt.s32.totalorder %s15, 1
        %s131 = scalar_select %p130, %s15, 1
        %s132 = smul.addr %s131, 32
        %s133 = smul.addr %s132, 8
        %s134 = scalar_lea.vmem %s1, %s133
        %v135 = vld [vmem:[%s111] sm:$0xff]
        %v137 = vcombine.high %v135, %v135
        %139 = vxpose.xlu0.b32.start [1/16] %v135, 128
        %140 = vxpose.xlu0.b32.cont [2/16] 0.0, 128
        %141 = vxpose.xlu0.b32.cont [3/16] 0.0, 128
        %142 = vxpose.xlu0.b32.cont [4/16] 0.0, 128
        %143 = vxpose.xlu0.b32.cont [5/16] 0.0, 128
        %144 = vxpose.xlu0.b32.cont [6/16] 0.0, 128
        %145 = vxpose.xlu0.b32.cont [7/16] 0.0, 128
        %146 = vxpose.xlu0.b32.cont [8/16] 0.0, 128
        %147 = vxpose.xlu0.b32.cont [9/16] 0.0, 128
        %148 = vxpose.xlu0.b32.cont [10/16] 0.0, 128
        %149 = vxpose.xlu0.b32.cont [11/16] 0.0, 128
        %150 = vxpose.xlu0.b32.cont [12/16] 0.0, 128
        %151 = vxpose.xlu0.b32.cont [13/16] 0.0, 128
        %152 = vxpose.xlu0.b32.cont [14/16] 0.0, 128
        %153 = vxpose.xlu0.b32.cont [15/16] 0.0, 128
        %154 = vxpose.xlu0.b32.end [16/16] 0.0, 128
        %v155 = vpop.trf.xlu0
        %v156 = vpop.trf.xlu0
        %v157 = vpop.trf.xlu0
        %v158 = vpop.trf.xlu0
        %v159 = vpop.trf.xlu0
        %v160 = vpop.trf.xlu0
        %v161 = vpop.trf.xlu0
        %v162 = vpop.trf.xlu0
        %v163 = vpop.trf.xlu0
        %v164 = vpop.trf.xlu0
        %v165 = vpop.trf.xlu0
        %v166 = vpop.trf.xlu0
        %v167 = vpop.trf.xlu0
        %v168 = vpop.trf.xlu0
        %v169 = vpop.trf.xlu0
        %v170 = vpop.trf.xlu0
        %171 = vxpose.xlu0.b32.start [1/16] %v137, 128
        %172 = vxpose.xlu0.b32.cont [2/16] 0.0, 128
        %173 = vxpose.xlu0.b32.cont [3/16] 0.0, 128
        %174 = vxpose.xlu0.b32.cont [4/16] 0.0, 128
        %175 = vxpose.xlu0.b32.cont [5/16] 0.0, 128
        %176 = vxpose.xlu0.b32.cont [6/16] 0.0, 128
        %177 = vxpose.xlu0.b32.cont [7/16] 0.0, 128
        %178 = vxpose.xlu0.b32.cont [8/16] 0.0, 128
        %179 = vxpose.xlu0.b32.cont [9/16] 0.0, 128
        %180 = vxpose.xlu0.b32.cont [10/16] 0.0, 128
        %181 = vxpose.xlu0.b32.cont [11/16] 0.0, 128
        %182 = vxpose.xlu0.b32.cont [12/16] 0.0, 128
        %183 = vxpose.xlu0.b32.cont [13/16] 0.0, 128
        %184 = vxpose.xlu0.b32.cont [14/16] 0.0, 128
        %185 = vxpose.xlu0.b32.cont [15/16] 0.0, 128
        %186 = vxpose.xlu0.b32.end [16/16] 0.0, 128
        %v187 = vpop.trf.xlu0
        %v188 = vpop.trf.xlu0
        %v189 = vpop.trf.xlu0
        %v190 = vpop.trf.xlu0
        %v191 = vpop.trf.xlu0
        %v192 = vpop.trf.xlu0
        %v193 = vpop.trf.xlu0
        %v194 = vpop.trf.xlu0
        %v195 = vpop.trf.xlu0
        %v196 = vpop.trf.xlu0
        %v197 = vpop.trf.xlu0
        %v198 = vpop.trf.xlu0
        %v199 = vpop.trf.xlu0
        %v200 = vpop.trf.xlu0
        %v201 = vpop.trf.xlu0
        %v202 = vpop.trf.xlu0
        %vm203 = vcmask 31744
        %204 = vst.msk [vmem:[%s134] sm:$0xff] %vm203, %v155
        %205 = vst.msk [vmem:[%s134 + $0x8] sm:$0xff] %vm203, %v156
        %206 = vst.msk [vmem:[%s134 + $0x10] sm:$0xff] %vm203, %v157
        %207 = vst.msk [vmem:[%s134 + $0x18] sm:$0xff] %vm203, %v158
        %208 = vst.msk [vmem:[%s134 + $0x20] sm:$0xff] %vm203, %v159
        %209 = vst.msk [vmem:[%s134 + $0x28] sm:$0xff] %vm203, %v160
        %210 = vst.msk [vmem:[%s134 + $0x30] sm:$0xff] %vm203, %v161
        %211 = vst.msk [vmem:[%s134 + $0x38] sm:$0xff] %vm203, %v162
        %212 = vst.msk [vmem:[%s134 + $0x40] sm:$0xff] %vm203, %v163
        %213 = vst.msk [vmem:[%s134 + $0x48] sm:$0xff] %vm203, %v164
        %214 = vst.msk [vmem:[%s134 + $0x50] sm:$0xff] %vm203, %v165
        %215 = vst.msk [vmem:[%s134 + $0x58] sm:$0xff] %vm203, %v166
        %216 = vst.msk [vmem:[%s134 + $0x60] sm:$0xff] %vm203, %v167
        %217 = vst.msk [vmem:[%s134 + $0x68] sm:$0xff] %vm203, %v168
        %218 = vst.msk [vmem:[%s134 + $0x70] sm:$0xff] %vm203, %v169
        %219 = vst.msk [vmem:[%s134 + $0x78] sm:$0xff] %vm203, %v170
        %220 = vst.msk [vmem:[%s134 + $0x80] sm:$0xff] %vm203, %v187
        %221 = vst.msk [vmem:[%s134 + $0x88] sm:$0xff] %vm203, %v188
        %222 = vst.msk [vmem:[%s134 + $0x90] sm:$0xff] %vm203, %v189
        %223 = vst.msk [vmem:[%s134 + $0x98] sm:$0xff] %vm203, %v190
        %224 = vst.msk [vmem:[%s134 + $0xa0] sm:$0xff] %vm203, %v191
        %225 = vst.msk [vmem:[%s134 + $0xa8] sm:$0xff] %vm203, %v192
        %226 = vst.msk [vmem:[%s134 + $0xb0] sm:$0xff] %vm203, %v193
        %227 = vst.msk [vmem:[%s134 + $0xb8] sm:$0xff] %vm203, %v194
        %228 = vst.msk [vmem:[%s134 + $0xc0] sm:$0xff] %vm203, %v195
        %229 = vst.msk [vmem:[%s134 + $0xc8] sm:$0xff] %vm203, %v196
        %230 = vst.msk [vmem:[%s134 + $0xd0] sm:$0xff] %vm203, %v197
        %231 = vst.msk [vmem:[%s134 + $0xd8] sm:$0xff] %vm203, %v198
        %232 = vst.msk [vmem:[%s134 + $0xe0] sm:$0xff] %vm203, %v199
        %233 = vst.msk [vmem:[%s134 + $0xe8] sm:$0xff] %vm203, %v200
        %234 = vst.msk [vmem:[%s134 + $0xf0] sm:$0xff] %vm203, %v201
        %235 = vst.msk [vmem:[%s134 + $0xf8] sm:$0xff] %vm203, %v202
        %p236 = scmp.lt.s32.totalorder %s15, 1
        %s237 = scalar_select %p236, %s15, 1
        %s238 = smul.addr %s237, 32
        %s239 = smul.addr %s238, 8
        %s240 = scalar_lea.vmem %s1, %s239
        // Predicated region
        $region29: #{tpu_custom_call.1} parent=23 // pred_check
          %p241 = pneg %p59
        $region30: #{tpu_custom_call.1} parent=23 // pred_check_branch
          %243 = sbr.rel (%p241) target = $region32
        $region31: #{tpu_custom_call.1} parent=23 // pred_region
          _
        $region32: #{tpu_custom_call.1} parent=23 // pred_fallthru
          _
      $region24: #{tpu_custom_call.1} parent=5 // pred_fallthru
        _
      %p244 = scmp.le.s32.totalorder 2, %s10
      // Predicated region
      $region33: #{tpu_custom_call.1} parent=5 // pred_check
        %p245 = pneg %p244
      $region34: #{tpu_custom_call.1} parent=5 // pred_check_branch
        %247 = sbr.rel (%p245) target = $region36
      $region35: #{tpu_custom_call.1} parent=5 // pred_region
        %s248 = ssub.s32 %s10, 2
        // Predicated region
        $region37: #{tpu_custom_call.1} parent=35 // pred_check
          %p249 = pneg %p65
        $region38: #{tpu_custom_call.1} parent=35 // pred_check_branch
          %251 = sbr.rel (%p249) target = $region40
        $region39: #{tpu_custom_call.1} parent=35 // pred_region
          %p252 = scmp.lt.s32.totalorder %s16, 1
          %s253 = scalar_select %p252, %s16, 1
          %s254 = smul.addr %s253, 32
          %s255 = smul.addr %s254, 8
          %s256 = scalar_lea.vmem %s1, %s255
        $region40: #{tpu_custom_call.1} parent=35 // pred_fallthru
          _
      $region36: #{tpu_custom_call.1} parent=5 // pred_fallthru
        _
    $region6: #{tpu_custom_call.1} parent=1 // loop_footer
      %s14 = sadd.s32 1, %s10
    $region7: #{tpu_custom_call.1} parent=1 // loop_footer_branch
      %9 = sbr.rel target = $region3
    $region8: #{tpu_custom_call.1} parent=1 // loop_exit
      _
    %257 = vsyncpa [#allocation3], 1
    %s258 = scalar_lea.sflag [#allocation3], 1
    %259 = vsyncpa %s258, 1

</llo_original>
